<compile_context>
chip_gen: v6e
topology: v6e:2x2x1
jax: 0.10.0
libtpu: 0.0.40
codegen_flags: <defaults>
</compile_context>

<pallas_src>
import jax
import jax.numpy as jnp
from jax.experimental import pallas as pl
from jax.experimental.pallas import tpu as pltpu

_LANE = 128


def _round_up(v, m):
    return (v + m - 1) // m * m


def _choose_row_tiling(n):
    """Pick (n_pad, tm): prefer big row tiles, keep >= 2 row tiles for v7x megacore."""
    n_pad = _round_up(n, _LANE)
    if n_pad <= _LANE:
        return _LANE, _LANE                       # tiny graph: single 128-row tile
    for tm in (512, 256, 128):
        if n_pad >= 2 * tm:
            return _round_up(n_pad, tm), tm
    return n_pad, _LANE                           # unreachable, defensive


def _odefunc_kernel(g2_ref, x_ref, w1t_ref, b1_ref, w2r_ref, b2_ref, f_ref):
    tm = f_ref.shape[0]
    row0 = pl.multiple_of(pl.program_id(0) * tm, tm)

    # Main product: (tm, N_pad) bf16 @ (N_pad, D_pad) bf16 -> (tm, D_pad) f32 on the MXU.
    x_bf16 = x_ref[...].astype(jnp.bfloat16)
    ax = jnp.dot(g2_ref[...], x_bf16, preferred_element_type=jnp.float32)

    # Gate alph = sigmoid(Linear2(Linear1(x_row)))  (small side work: MXU/VPU/XLU/EUP).
    x_row = x_ref[pl.ds(row0, tm), :]                                   # (tm, D_pad) f32
    h = jnp.dot(x_row.astype(jnp.bfloat16), w1t_ref[...],
                preferred_element_type=jnp.float32) + b1_ref[...]       # (tm, H_pad)
    # Second linear has output width 1 -> VPU multiply + lane reduce (no MXU).
    s = jnp.sum(h * w2r_ref[...], axis=-1, keepdims=True) + b2_ref[...]  # (tm, 1)
    alph = jax.nn.sigmoid(s)

    f_ref[...] = (alph * ax - x_row).astype(f_ref.dtype)


def make_odefunc(g, w1, b1, w2, b2):
    """Build a jitted forward(t, x) for ODEFunc with all constants precomputed once.

    g:  (N, N) dense adjacency (torch.spmm with a dense operand == dense matmul)
    w1: (H, D), b1: (H,)  -- linear2_u   (H = D // 2)
    w2: (1, H), b2: (1,)  -- linear2_u_1
    """
    N = g.shape[0]
    H, D = w1.shape

    N_pad, tm = _choose_row_tiling(N)
    D_pad = _round_up(D, _LANE)
    H_pad = _round_up(H, _LANE)

    # ---- one-time constant plumbing (hoisted out of the per-evaluation forward) ----
    g_pad = jnp.zeros((N_pad, N_pad), jnp.float32).at[:N, :N].set(g.astype(jnp.float32))
    g2 = jnp.dot(g_pad, g_pad).astype(jnp.bfloat16)                      # (N_pad, N_pad)
    w1t = jnp.zeros((D_pad, H_pad), jnp.bfloat16).at[:D, :H].set(
        w1.T.astype(jnp.bfloat16))                                       # pre-transposed
    b1p = jnp.zeros((1, H_pad), jnp.float32).at[0, :H].set(b1.astype(jnp.float32))
    w2r = jnp.zeros((1, H_pad), jnp.float32).at[0, :H].set(
        w2.reshape(-1).astype(jnp.float32))
    b2p = jnp.asarray(b2, jnp.float32).reshape(1, 1)

    grid = (N_pad // tm,)

    # VMEM footprint estimate -> modest compiler limit (never the full 64 MiB of v7x).
    vmem_need = (2 * tm * N_pad * 2            # g2 row panel, double-buffered, bf16
                 + N_pad * D_pad * (4 + 2)     # resident x (f32) + transient bf16 cast
                 + 2 * tm * D_pad * 2          # output tile, double-buffered, bf16
                 + tm * D_pad * 4              # ax f32
                 + tm * H_pad * 4              # h f32
                 + D_pad * H_pad * 2 + 3 * H_pad * 4)
    vmem_limit = int(min(max(16 * 1024 * 1024, 2 * vmem_need), 48 * 1024 * 1024))

    cost = pl.CostEstimate(
        flops=int(2 * N_pad * N_pad * D_pad          # g2 @ x
                  + 2 * N_pad * D_pad * H_pad        # Linear1
                  + 3 * N_pad * H_pad                # gate reduce
                  + 2 * N_pad * D_pad),              # scale + subtract
        transcendentals=int(N_pad),                  # sigmoid per row
        bytes_accessed=int(N_pad * N_pad * 2         # g2 (bf16)
                           + N_pad * D_pad * 4       # x (f32, single stream)
                           + N_pad * D_pad * 2       # output (bf16)
                           + D_pad * H_pad * 2 + (2 * H_pad + 1) * 4),
    )

    kernel_call = pl.pallas_call(
        _odefunc_kernel,
        out_shape=jax.ShapeDtypeStruct((N_pad, D_pad), jnp.bfloat16),
        grid_spec=pltpu.PrefetchScalarGridSpec(
            num_scalar_prefetch=0,
            grid=grid,
            in_specs=[
                # g2 row panel (streamed; add pipeline_mode=pl.Buffered(3) only if
                # profiling still shows exposed DMA after the big tiles).
                pl.BlockSpec((tm, N_pad), lambda i: (i, 0)),
                pl.BlockSpec((N_pad, D_pad), lambda i: (0, 0)),   # x, resident, f32
                pl.BlockSpec((D_pad, H_pad), lambda i: (0, 0)),   # w1^T (bf16)
                pl.BlockSpec((1, H_pad), lambda i: (0, 0)),       # b1
                pl.BlockSpec((1, H_pad), lambda i: (0, 0)),       # w2 row
                pl.BlockSpec((1, 1), lambda i: (0, 0)),           # b2
            ],
            out_specs=pl.BlockSpec((tm, D_pad), lambda i: (i, 0)),
        ),
        compiler_params=pltpu.CompilerParams(
            dimension_semantics=("parallel",),
            vmem_limit_bytes=vmem_limit,
        ),
        cost_estimate=cost,
    )

    @jax.jit
    def forward(t, x):
        del t  # unused, as in the PyTorch module
        x_pad = jnp.zeros((N_pad, D_pad), jnp.float32).at[:N, :D].set(
            x.astype(jnp.float32))
        out = kernel_call(g2, x_pad, w1t, b1p, w2r, b2p)
        return out[:N, :D].astype(jnp.float32)

    return forward


def odefunc_reference(g, x, w1, b1, w2, b2):
    """Plain-JAX f32 reference mirroring the PyTorch forward."""
    h = x @ w1.T + b1
    s = h @ w2.T + b2
    alph = jax.nn.sigmoid(s)
    ax = g @ x
    ax = alph * (g @ ax)
    return ax - x


# TODO(synk): the 'Cell_Phones_and_Accessories' single-linear branch is a strict subset
# (drop Linear1); only the general two-linear branch is implemented.

if __name__ == "__main__":
    # Shapes implied by the module: N graph nodes, latent_dim = D, hidden = D // 2.
    # N = 384 pads to 512 with 256-row tiles -> a 2-entry "parallel" row grid.
    N, D = 384, 32
    H = D // 2

    key = jax.random.PRNGKey(0)
    kg, kx, kw1, kb1, kw2, kb2 = jax.random.split(key, 6)

    # Deterministic synthetic adjacency (normalized-ish dense matrix) and inputs.
    g = jax.random.uniform(kg, (N, N), dtype=jnp.float32) / N
    x = jax.random.normal(kx, (N, D), dtype=jnp.float32)

    # PyTorch nn.Linear-style init bounds (uniform +/- 1/sqrt(fan_in)).
    bound1 = 1.0 / jnp.sqrt(jnp.float32(D))
    w1 = jax.random.uniform(kw1, (H, D), dtype=jnp.float32, minval=-bound1, maxval=bound1)
    b1 = jax.random.uniform(kb1, (H,), dtype=jnp.float32, minval=-bound1, maxval=bound1)
    bound2 = 1.0 / jnp.sqrt(jnp.float32(H))
    w2 = jax.random.uniform(kw2, (1, H), dtype=jnp.float32, minval=-bound2, maxval=bound2)
    b2 = jax.random.uniform(kb2, (1,), dtype=jnp.float32, minval=-bound2, maxval=bound2)

    forward = make_odefunc(g, w1, b1, w2, b2)   # constants + g2 built once here
    out = forward(0.0, x)                       # one ODE-solver evaluation
    jax.block_until_ready(out)

    ref = odefunc_reference(g, x, w1, b1, w2, b2)
    assert out.shape == (N, D)
    # bf16 MXU operands + bf16 output write-back -> compare with a mixed abs/rel bound.
    err = float(jnp.max(jnp.abs(out - ref) / (1.0 + jnp.abs(ref))))
    assert err < 2e-2, f"Pallas kernel mismatch vs reference (max mixed err {err})"

    print("KERNEL_OK")
</pallas_src>

<mosaic_0001>
module attributes {stable_mosaic.version = 11 : i64} {
  func.func @_odefunc_kernel(%arg0: i32, %arg1: memref<128x384xbf16, #tpu.memory_space<vmem>>, %arg2: memref<384x128xf32, #tpu.memory_space<vmem>>, %arg3: memref<128x128xbf16, #tpu.memory_space<vmem>>, %arg4: memref<1x128xf32, #tpu.memory_space<vmem>>, %arg5: memref<1x128xf32, #tpu.memory_space<vmem>>, %arg6: memref<1x1xf32, #tpu.memory_space<vmem>>, %arg7: memref<128x128xbf16, #tpu.memory_space<vmem>>) attributes {dimension_semantics = [#tpu.dimension_semantics<parallel>], iteration_bounds = array<i64: 3>, scalar_prefetch = 0 : i64, scratch_operands = 0 : i64, tpu.core_type = #tpu.core_type<tc>, window_params = [{transform_indices = @transform_0, window_bounds = array<i64: 128, 384>}, {pipeline_mode = #tpu.pipeline_mode<synchronous>, transform_indices = @transform_1, window_bounds = array<i64: 384, 128>}, {pipeline_mode = #tpu.pipeline_mode<synchronous>, transform_indices = @transform_2, window_bounds = array<i64: 128, 128>}, {pipeline_mode = #tpu.pipeline_mode<synchronous>, transform_indices = @transform_3, window_bounds = array<i64: 1, 128>}, {pipeline_mode = #tpu.pipeline_mode<synchronous>, transform_indices = @transform_4, window_bounds = array<i64: 1, 128>}, {pipeline_mode = #tpu.pipeline_mode<synchronous>, transform_indices = @transform_5, window_bounds = array<i64: 1, 1>}, {transform_indices = @transform_6, window_bounds = array<i64: 128, 128>}]} {
    %c128_i32 = arith.constant 128 : i32
    %0 = arith.muli %arg0, %c128_i32 : i32
    %1 = tpu.assume_multiple %0, 128 : i32
    %c0 = arith.constant 0 : index
    %c0_0 = arith.constant 0 : index
    %2 = vector.load %arg2[%c0, %c0_0] : memref<384x128xf32, #tpu.memory_space<vmem>>, vector<384x128xf32>
    %3 = arith.truncf %2 : vector<384x128xf32> to vector<384x128xbf16>
    %c0_1 = arith.constant 0 : index
    %c0_2 = arith.constant 0 : index
    %4 = vector.load %arg1[%c0_1, %c0_2] : memref<128x384xbf16, #tpu.memory_space<vmem>>, vector<128x384xbf16>
    %cst = arith.constant dense<0.000000e+00> : vector<128x128xf32>
    %5 = tpu.matmul %4, %3, %cst {dimension_numbers = #tpu.dot_dimension_numbers<[1], [0], [0], [1], [0, 0, 1, 1], [], []>} : vector<128x384xbf16>, vector<384x128xbf16>, vector<128x128xf32> -> vector<128x128xf32>
    %6 = arith.index_cast %1 : i32 to index
    %c0_3 = arith.constant 0 : index
    %7 = vector.load %arg2[%6, %c0_3] : memref<384x128xf32, #tpu.memory_space<vmem>>, vector<128x128xf32>
    %8 = arith.truncf %7 : vector<128x128xf32> to vector<128x128xbf16>
    %c0_4 = arith.constant 0 : index
    %c0_5 = arith.constant 0 : index
    %9 = vector.load %arg3[%c0_4, %c0_5] : memref<128x128xbf16, #tpu.memory_space<vmem>>, vector<128x128xbf16>
    %cst_6 = arith.constant dense<0.000000e+00> : vector<128x128xf32>
    %10 = tpu.matmul %8, %9, %cst_6 {dimension_numbers = #tpu.dot_dimension_numbers<[1], [0], [0], [1], [0, 0, 1, 1], [], []>} : vector<128x128xbf16>, vector<128x128xbf16>, vector<128x128xf32> -> vector<128x128xf32>
    %c0_7 = arith.constant 0 : index
    %c0_8 = arith.constant 0 : index
    %11 = vector.load %arg4[%c0_7, %c0_8] : memref<1x128xf32, #tpu.memory_space<vmem>>, vector<1x128xf32>
    %12 = vector.broadcast %11 : vector<1x128xf32> to vector<128x128xf32>
    %13 = arith.addf %10, %12 : vector<128x128xf32>
    %c0_9 = arith.constant 0 : index
    %c0_10 = arith.constant 0 : index
    %14 = vector.load %arg5[%c0_9, %c0_10] : memref<1x128xf32, #tpu.memory_space<vmem>>, vector<1x128xf32>
    %15 = vector.broadcast %14 : vector<1x128xf32> to vector<128x128xf32>
    %16 = arith.mulf %13, %15 : vector<128x128xf32>
    %cst_11 = arith.constant dense<0.000000e+00> : vector<128xf32>
    %17 = vector.multi_reduction <add>, %16, %cst_11 [1] : vector<128x128xf32> to vector<128xf32>
    %18 = vector.shape_cast %17 : vector<128xf32> to vector<128x1xf32>
    %c0_12 = arith.constant 0 : index
    %c0_13 = arith.constant 0 : index
    %19 = vector.load %arg6[%c0_12, %c0_13] : memref<1x1xf32, #tpu.memory_space<vmem>>, vector<1x1xf32>
    %20 = vector.broadcast %19 : vector<1x1xf32> to vector<128x1xf32>
    %21 = arith.addf %18, %20 : vector<128x1xf32>
    %22 = arith.negf %21 : vector<128x1xf32>
    %23 = math.exp %22 : vector<128x1xf32>
    %cst_14 = arith.constant 1.000000e+00 : f32
    %24 = vector.broadcast %cst_14 : f32 to vector<128x1xf32>
    %25 = arith.addf %24, %23 : vector<128x1xf32>
    %26 = arith.divf %24, %25 : vector<128x1xf32>
    %27 = vector.broadcast %26 : vector<128x1xf32> to vector<128x128xf32>
    %28 = arith.mulf %27, %5 : vector<128x128xf32>
    %29 = arith.subf %28, %7 : vector<128x128xf32>
    %30 = arith.truncf %29 : vector<128x128xf32> to vector<128x128xbf16>
    %c0_15 = arith.constant 0 : index
    %c0_16 = arith.constant 0 : index
    %31 = vector.load %arg7[%c0_15, %c0_16] : memref<128x128xbf16, #tpu.memory_space<vmem>>, vector<128x128xbf16>
    tpu.vector_store %arg7[%c0_15, %c0_16], %30 {strides = array<i32>} : memref<128x128xbf16, #tpu.memory_space<vmem>>, vector<128x128xbf16>,
    return
  }
  func.func @transform_0(%arg0: i32) -> (i32, i32) {
    %c0_i32 = arith.constant 0 : i32
    %c0_i32_0 = arith.constant 0 : i32
    return %arg0, %c0_i32 : i32, i32
  }
  func.func @transform_1(%arg0: i32) -> (i32, i32) {
    %c0_i32 = arith.constant 0 : i32
    %c0_i32_0 = arith.constant 0 : i32
    %c0_i32_1 = arith.constant 0 : i32
    return %c0_i32, %c0_i32_0 : i32, i32
  }
  func.func @transform_2(%arg0: i32) -> (i32, i32) {
    %c0_i32 = arith.constant 0 : i32
    %c0_i32_0 = arith.constant 0 : i32
    %c0_i32_1 = arith.constant 0 : i32
    return %c0_i32, %c0_i32_0 : i32, i32
  }
  func.func @transform_3(%arg0: i32) -> (i32, i32) {
    %c0_i32 = arith.constant 0 : i32
    %c0_i32_0 = arith.constant 0 : i32
    %c0_i32_1 = arith.constant 0 : i32
    return %c0_i32, %c0_i32_0 : i32, i32
  }
  func.func @transform_4(%arg0: i32) -> (i32, i32) {
    %c0_i32 = arith.constant 0 : i32
    %c0_i32_0 = arith.constant 0 : i32
    %c0_i32_1 = arith.constant 0 : i32
    return %c0_i32, %c0_i32_0 : i32, i32
  }
  func.func @transform_5(%arg0: i32) -> (i32, i32) {
    %c0_i32 = arith.constant 0 : i32
    %c0_i32_0 = arith.constant 0 : i32
    %c0_i32_1 = arith.constant 0 : i32
    return %c0_i32, %c0_i32_0 : i32, i32
  }
  func.func @transform_6(%arg0: i32) -> (i32, i32) {
    %c0_i32 = arith.constant 0 : i32
    %c0_i32_0 = arith.constant 0 : i32
    return %arg0, %c0_i32 : i32, i32
  }
}

</mosaic_0001>

<llo_original>
// kernel: forward.1
$region0: #{forward.1}
  #allocation0 [shape = 'u32[]', space=smem, size = 0x4, offset = 0x4, fixed_abs, tag = 'smem constant byte address 0x4 - core index']
  #allocation1 [shape = 'u32[144,128]{1,0:T(1,128)}', space=vmem, size = 0x12000, scoped, tag = 'internal scratch']
  #allocation2 [shape = 'f32[1,1]{1,0:T(1,128)S(1)}', space=vmem, size = 0x200, scoped, tag = 'scoped memory for forward.1']
  %s0 = inlined_call_operand.vmem [shape: bf16[384,384], index: 0, kind: input, shape index: {}]
  %s1 = inlined_call_operand.vmem [shape: f32[384,128], index: 1, kind: input, shape index: {}]
  %s2 = inlined_call_operand.vmem [shape: bf16[128,128], index: 2, kind: input, shape index: {}]
  %s3 = inlined_call_operand.vmem [shape: f32[1,128], index: 3, kind: input, shape index: {}]
  %s4 = inlined_call_operand.vmem [shape: f32[1,128], index: 4, kind: input, shape index: {}]
  %s5 = inlined_call_operand.<no memory space> [shape: f32[1,1], index: 5, kind: input, shape index: {}]
  %s6 = inlined_call_operand.vmem [shape: bf16[384,128], index: 6, kind: output, shape index: {}]
  %s7 = sld [smem:[#allocation0]]
  $region57: #{forward.1} parent=0
    _
  %s9 = ssub.s32 1, %s7
  %s10 = scalar_select 0, %s9, %s7
  %v11 = vstv %s5
  %12 = vst [vmem:[#allocation2] sm:$0x1] %v11
  loop: start=0, step=1, limit=5
  $region2: #{forward.1} parent=0 // loop_pre_header
    _
  $region3: #{forward.1} parent=0 // loop_header
    %s14 = sphi 0, %s18
    %p15 = scmp.ge.s32.totalorder %s14, 5
    %s24 = sphi 0, %s26
    %s27 = sphi 0, %s24
    %s28 = sphi 0, %s27
    %s44 = sphi 0, %s28
    %s48 = sphi 0, %s48
    %s50 = sphi 0, %s48
    %s51 = sphi 0, %s50
    %s65 = sphi 0, %s51
    %s69 = sphi 0, %s69
    %s71 = sphi 0, %s69
    %s72 = sphi 0, %s71
    %s86 = sphi 0, %s72
    %s90 = sphi 0, %s90
    %s92 = sphi 0, %s90
    %s93 = sphi 0, %s92
    %s107 = sphi 0, %s93
    %s111 = sphi 0, %s111
    %s113 = sphi 0, %s111
    %s114 = sphi 0, %s113
    %s128 = sphi 0, %s114
    %s132 = sphi 0, %s132
    %s134 = sphi 0, %s132
    %s135 = sphi 0, %s134
    %s149 = sphi 0, %s135
    %s155 = sphi 0, %s157
    %s158 = sphi 0, %s155
    %s159 = sphi 0, %s158
    %s175 = sphi 0, %s159
  $region4: #{forward.1} parent=0 // loop_header_branch
    %17 = sbr.rel (%p15) target = $region8
  $region5: #{forward.1} parent=0 // loop_body
    %s19 = ssub.s32 %s14, 1
    %s20 = ssub.s32 %s14, 2
    %s21 = sadd.s32 %s14, 1
    %s22 = ssub.s32 %s14, %s21
    %p23 = scmp.eq.s32.totalorder %s22, 0
    %s25 = sadd.s32 %s24, 1
    %s26 = scalar_select %p23, %s24, %s25
    %p29 = pneg %p23
    %p30 = scmp.eq.s32.totalorder %s14, 2
    %p31 = por %p29, %p30
    %p32 = scmp.ne.s32.totalorder %s24, %s27
    %p33 = scmp.eq.s32.totalorder %s14, 0
    %p34 = por %p32, %p33
    %p35 = scmp.ne.s32.totalorder %s24, %s27
    %p36 = scmp.eq.s32.totalorder %s19, 2
    %p37 = por %p35, %p36
    %p38 = scmp.ne.s32.totalorder %s27, %s28
    %p39 = scmp.eq.s32.totalorder %s19, 0
    %p40 = por %p38, %p39
    %p41 = scmp.ne.s32.totalorder %s27, %s28
    %p42 = scmp.eq.s32.totalorder %s20, 2
    %p43 = por %p41, %p42
    %p45 = scmp.ne.s32.totalorder %s28, %s44
    %p46 = scmp.eq.s32.totalorder %s20, 0
    %p47 = por %p45, %p46
    %s49 = sadd.s32 %s48, 1
    %p52 = scmp.eq.s32.totalorder %s14, 2
    %p53 = scmp.ne.s32.totalorder %s48, %s50
    %p54 = scmp.eq.s32.totalorder %s14, 0
    %p55 = por %p53, %p54
    %p56 = scmp.ne.s32.totalorder %s48, %s50
    %p57 = scmp.eq.s32.totalorder %s19, 2
    %p58 = por %p56, %p57
    %p59 = scmp.ne.s32.totalorder %s50, %s51
    %p60 = scmp.eq.s32.totalorder %s19, 0
    %p61 = por %p59, %p60
    %p62 = scmp.ne.s32.totalorder %s50, %s51
    %p63 = scmp.eq.s32.totalorder %s20, 2
    %p64 = por %p62, %p63
    %p66 = scmp.ne.s32.totalorder %s51, %s65
    %p67 = scmp.eq.s32.totalorder %s20, 0
    %p68 = por %p66, %p67
    %s70 = sadd.s32 %s69, 1
    %p73 = scmp.eq.s32.totalorder %s14, 2
    %p74 = scmp.ne.s32.totalorder %s69, %s71
    %p75 = scmp.eq.s32.totalorder %s14, 0
    %p76 = por %p74, %p75
    %p77 = scmp.ne.s32.totalorder %s69, %s71
    %p78 = scmp.eq.s32.totalorder %s19, 2
    %p79 = por %p77, %p78
    %p80 = scmp.ne.s32.totalorder %s71, %s72
    %p81 = scmp.eq.s32.totalorder %s19, 0
    %p82 = por %p80, %p81
    %p83 = scmp.ne.s32.totalorder %s71, %s72
    %p84 = scmp.eq.s32.totalorder %s20, 2
    %p85 = por %p83, %p84
    %p87 = scmp.ne.s32.totalorder %s72, %s86
    %p88 = scmp.eq.s32.totalorder %s20, 0
    %p89 = por %p87, %p88
    %s91 = sadd.s32 %s90, 1
    %p94 = scmp.eq.s32.totalorder %s14, 2
    %p95 = scmp.ne.s32.totalorder %s90, %s92
    %p96 = scmp.eq.s32.totalorder %s14, 0
    %p97 = por %p95, %p96
    %p98 = scmp.ne.s32.totalorder %s90, %s92
    %p99 = scmp.eq.s32.totalorder %s19, 2
    %p100 = por %p98, %p99
    %p101 = scmp.ne.s32.totalorder %s92, %s93
    %p102 = scmp.eq.s32.totalorder %s19, 0
    %p103 = por %p101, %p102
    %p104 = scmp.ne.s32.totalorder %s92, %s93
    %p105 = scmp.eq.s32.totalorder %s20, 2
    %p106 = por %p104, %p105
    %p108 = scmp.ne.s32.totalorder %s93, %s107
    %p109 = scmp.eq.s32.totalorder %s20, 0
    %p110 = por %p108, %p109
    %s112 = sadd.s32 %s111, 1
    %p115 = scmp.eq.s32.totalorder %s14, 2
    %p116 = scmp.ne.s32.totalorder %s111, %s113
    %p117 = scmp.eq.s32.totalorder %s14, 0
    %p118 = por %p116, %p117
    %p119 = scmp.ne.s32.totalorder %s111, %s113
    %p120 = scmp.eq.s32.totalorder %s19, 2
    %p121 = por %p119, %p120
    %p122 = scmp.ne.s32.totalorder %s113, %s114
    %p123 = scmp.eq.s32.totalorder %s19, 0
    %p124 = por %p122, %p123
    %p125 = scmp.ne.s32.totalorder %s113, %s114
    %p126 = scmp.eq.s32.totalorder %s20, 2
    %p127 = por %p125, %p126
    %p129 = scmp.ne.s32.totalorder %s114, %s128
    %p130 = scmp.eq.s32.totalorder %s20, 0
    %p131 = por %p129, %p130
    %s133 = sadd.s32 %s132, 1
    %p136 = scmp.eq.s32.totalorder %s14, 2
    %p137 = scmp.ne.s32.totalorder %s132, %s134
    %p138 = scmp.eq.s32.totalorder %s14, 0
    %p139 = por %p137, %p138
    %p140 = scmp.ne.s32.totalorder %s132, %s134
    %p141 = scmp.eq.s32.totalorder %s19, 2
    %p142 = por %p140, %p141
    %p143 = scmp.ne.s32.totalorder %s134, %s135
    %p144 = scmp.eq.s32.totalorder %s19, 0
    %p145 = por %p143, %p144
    %p146 = scmp.ne.s32.totalorder %s134, %s135
    %p147 = scmp.eq.s32.totalorder %s20, 2
    %p148 = por %p146, %p147
    %p150 = scmp.ne.s32.totalorder %s135, %s149
    %p151 = scmp.eq.s32.totalorder %s20, 0
    %p152 = por %p150, %p151
    %s153 = ssub.s32 %s14, %s21
    %p154 = scmp.eq.s32.totalorder %s153, 0
    %s156 = sadd.s32 %s155, 1
    %s157 = scalar_select %p154, %s155, %s156
    %p160 = pneg %p154
    %p161 = scmp.eq.s32.totalorder %s14, 2
    %p162 = por %p160, %p161
    %p163 = scmp.ne.s32.totalorder %s155, %s158
    %p164 = scmp.eq.s32.totalorder %s14, 0
    %p165 = por %p163, %p164
    %p166 = scmp.ne.s32.totalorder %s155, %s158
    %p167 = scmp.eq.s32.totalorder %s19, 2
    %p168 = por %p166, %p167
    %p169 = scmp.ne.s32.totalorder %s158, %s159
    %p170 = scmp.eq.s32.totalorder %s19, 0
    %p171 = por %p169, %p170
    %p172 = scmp.ne.s32.totalorder %s158, %s159
    %p173 = scmp.eq.s32.totalorder %s20, 2
    %p174 = por %p172, %p173
    %p176 = scmp.ne.s32.totalorder %s159, %s175
    %p177 = scmp.eq.s32.totalorder %s20, 0
    %p178 = por %p176, %p177
    %p179 = scmp.le.s32.totalorder 1, %s14
    %p180 = scmp.lt.s32.totalorder %s14, 4
    %p181 = pnand %p179, %p180
    %p182 = pneg %p181
    // Predicated region
    $region9: #{forward.1} parent=5 // pred_check
      _
    $region10: #{forward.1} parent=5 // pred_check_branch
      %184 = sbr.rel (%p181) target = $region12
    $region11: #{forward.1} parent=5 // pred_region
      %s185 = ssub.s32 %s14, 1
      // Predicated region
      $region13: #{forward.1} parent=11 // pred_check
        %p186 = pneg %p61
      $region14: #{forward.1} parent=11 // pred_check_branch
        %188 = sbr.rel (%p186) target = $region16
      $region15: #{forward.1} parent=11 // pred_region
        _
      $region16: #{forward.1} parent=11 // pred_fallthru
        _
      // Predicated region
      $region17: #{forward.1} parent=11 // pred_check
        %p189 = pneg %p82
      $region18: #{forward.1} parent=11 // pred_check_branch
        %191 = sbr.rel (%p189) target = $region20
      $region19: #{forward.1} parent=11 // pred_region
        _
      $region20: #{forward.1} parent=11 // pred_fallthru
        _
      // Predicated region
      $region21: #{forward.1} parent=11 // pred_check
        %p192 = pneg %p103
      $region22: #{forward.1} parent=11 // pred_check_branch
        %194 = sbr.rel (%p192) target = $region24
      $region23: #{forward.1} parent=11 // pred_region
        _
      $region24: #{forward.1} parent=11 // pred_fallthru
        _
      // Predicated region
      $region25: #{forward.1} parent=11 // pred_check
        %p195 = pneg %p124
      $region26: #{forward.1} parent=11 // pred_check_branch
        %197 = sbr.rel (%p195) target = $region28
      $region27: #{forward.1} parent=11 // pred_region
        _
      $region28: #{forward.1} parent=11 // pred_fallthru
        _
      // Predicated region
      $region29: #{forward.1} parent=11 // pred_check
        %p198 = pneg %p145
      $region30: #{forward.1} parent=11 // pred_check_branch
        %200 = sbr.rel (%p198) target = $region32
      $region31: #{forward.1} parent=11 // pred_region
        _
      $region32: #{forward.1} parent=11 // pred_fallthru
        _
    $region12: #{forward.1} parent=5 // pred_fallthru
      _
    %p201 = scmp.lt.s32.totalorder %s14, 3
    // Predicated region
    $region33: #{forward.1} parent=5 // pred_check
      %p202 = pneg %p201
    $region34: #{forward.1} parent=5 // pred_check_branch
      %204 = sbr.rel (%p202) target = $region36
    $region35: #{forward.1} parent=5 // pred_region
      // Predicated region
      $region37: #{forward.1} parent=35 // pred_check
        %p205 = pneg %p34
      $region38: #{forward.1} parent=35 // pred_check_branch
        %207 = sbr.rel (%p205) target = $region40
      $region39: #{forward.1} parent=35 // pred_region
        %s208 = smul.u32 16, %s14
        %p209 = scmp.lt.s32.totalorder %s208, 47
        %s210 = scalar_select %p209, %s208, 47
        %s211 = smul.addr %s210, 3
        %s212 = smul.addr %s211, 4
        %s213 = scalar_lea.vmem %s0, %s212
        %s214 = smul.u32 16, %s14
      $region40: #{forward.1} parent=35 // pred_fallthru
        _
    $region36: #{forward.1} parent=5 // pred_fallthru
      _
    %p215 = scmp.le.s32.totalorder 1, %s14
    %p216 = scmp.lt.s32.totalorder %s14, 4
    %p217 = pnand %p215, %p216
    %p218 = pneg %p217
    // Predicated region
    $region41: #{forward.1} parent=5 // pred_check
      _
    $region42: #{forward.1} parent=5 // pred_check_branch
      %220 = sbr.rel (%p217) target = $region44
    $region43: #{forward.1} parent=5 // pred_region
      %s221 = ssub.s32 %s14, 1
      %s222 = smul.u32 16, %s19
      %p223 = scmp.lt.s32.totalorder %s222, 47
      %s224 = scalar_select %p223, %s222, 47
      %s225 = smul.addr %s224, 3
      %s226 = smul.addr %s225, 4
      %s227 = scalar_lea.vmem %s0, %s226
      %p228 = pneg %p40
      %p229 = pneg %p37
      %p230 = pneg %p61
      %p231 = pneg %p58
      %p232 = pneg %p82
      %p233 = pneg %p79
      %p234 = pneg %p103
      %p235 = pneg %p100
      %p236 = pneg %p124
      %p237 = pneg %p121
      %p238 = pneg %p145
      %p239 = pneg %p142
      %p240 = pneg %p171
      %p241 = pneg %p168
      %s242 = smul.u32 16, %s19
      %p243 = scmp.lt.s32.totalorder %s242, 47
      %s244 = scalar_select %p243, %s242, 47
      %s245 = smul.addr %s244, 4
      %s246 = scalar_lea.vmem %s6, %s245
      %s247 = smul.u32 16, %s19
      %p248 = scmp.lt.s32.totalorder %s247, 47
      %s249 = scalar_select %p248, %s247, 47
      %s250 = smul.addr %s249, 3
      %s251 = smul.addr %s250, 4
      %s252 = scalar_lea.vmem %s0, %s251
      %s253 = smul.u32 16, %s19
      %s254 = smul.u32 16, %s19
      %p255 = scmp.lt.s32.totalorder %s254, 47
      %s256 = scalar_select %p255, %s254, 47
      %s257 = smul.addr %s256, 4
      %s258 = scalar_lea.vmem %s6, %s257
      %s259 = smul.u32 16, %s19
      %s261 = smul.u32 %s19, 128
      %v262 = vld [vmem:[%s1] sm:$0xff]
      %v263 = vld [vmem:[%s1 + $0x8] sm:$0xff]
      %v264 = vld [vmem:[%s1 + $0x10] sm:$0xff]
      %v265 = vld [vmem:[%s1 + $0x18] sm:$0xff]
      %v266 = vld [vmem:[%s1 + $0x20] sm:$0xff]
      %v267 = vld [vmem:[%s1 + $0x28] sm:$0xff]
      %v268 = vld [vmem:[%s1 + $0x30] sm:$0xff]
      %v269 = vld [vmem:[%s1 + $0x38] sm:$0xff]
      %v270 = vld [vmem:[%s1 + $0x40] sm:$0xff]
      %v271 = vld [vmem:[%s1 + $0x48] sm:$0xff]
      %v272 = vld [vmem:[%s1 + $0x50] sm:$0xff]
      %v273 = vld [vmem:[%s1 + $0x58] sm:$0xff]
      %v274 = vld [vmem:[%s1 + $0x60] sm:$0xff]
      %v275 = vld [vmem:[%s1 + $0x68] sm:$0xff]
      %v276 = vld [vmem:[%s1 + $0x70] sm:$0xff]
      %v277 = vld [vmem:[%s1 + $0x78] sm:$0xff]
      %v278 = vld [vmem:[%s1 + $0x80] sm:$0xff]
      %v279 = vld [vmem:[%s1 + $0x88] sm:$0xff]
      %v280 = vld [vmem:[%s1 + $0x90] sm:$0xff]
      %v281 = vld [vmem:[%s1 + $0x98] sm:$0xff]
      %v282 = vld [vmem:[%s1 + $0xa0] sm:$0xff]
      %v283 = vld [vmem:[%s1 + $0xa8] sm:$0xff]
      %v284 = vld [vmem:[%s1 + $0xb0] sm:$0xff]
      %v285 = vld [vmem:[%s1 + $0xb8] sm:$0xff]
      %v286 = vld [vmem:[%s1 + $0xc0] sm:$0xff]
      %v287 = vld [vmem:[%s1 + $0xc8] sm:$0xff]
      %v288 = vld [vmem:[%s1 + $0xd0] sm:$0xff]
      %v289 = vld [vmem:[%s1 + $0xd8] sm:$0xff]
      %v290 = vld [vmem:[%s1 + $0xe0] sm:$0xff]
      %v291 = vld [vmem:[%s1 + $0xe8] sm:$0xff]
      %v292 = vld [vmem:[%s1 + $0xf0] sm:$0xff]
      %v293 = vld [vmem:[%s1 + $0xf8] sm:$0xff]
      %v294 = vld [vmem:[%s1 + $0x100] sm:$0xff]
      %v295 = vld [vmem:[%s1 + $0x108] sm:$0xff]
      %v296 = vld [vmem:[%s1 + $0x110] sm:$0xff]
      %v297 = vld [vmem:[%s1 + $0x118] sm:$0xff]
      %v298 = vld [vmem:[%s1 + $0x120] sm:$0xff]
      %v299 = vld [vmem:[%s1 + $0x128] sm:$0xff]
      %v300 = vld [vmem:[%s1 + $0x130] sm:$0xff]
      %v301 = vld [vmem:[%s1 + $0x138] sm:$0xff]
      %v302 = vld [vmem:[%s1 + $0x140] sm:$0xff]
      %v303 = vld [vmem:[%s1 + $0x148] sm:$0xff]
      %v304 = vld [vmem:[%s1 + $0x150] sm:$0xff]
      %v305 = vld [vmem:[%s1 + $0x158] sm:$0xff]
      %v306 = vld [vmem:[%s1 + $0x160] sm:$0xff]
      %v307 = vld [vmem:[%s1 + $0x168] sm:$0xff]
      %v308 = vld [vmem:[%s1 + $0x170] sm:$0xff]
      %v309 = vld [vmem:[%s1 + $0x178] sm:$0xff]
      %v310 = vpack.c.bf16 %v263, %v262
      %v311 = vpack.c.bf16 %v265, %v264
      %v312 = vpack.c.bf16 %v267, %v266
      %v313 = vpack.c.bf16 %v269, %v268
      %v314 = vpack.c.bf16 %v271, %v270
      %v315 = vpack.c.bf16 %v273, %v272
      %v316 = vpack.c.bf16 %v275, %v274
      %v317 = vpack.c.bf16 %v277, %v276
      %v318 = vpack.c.bf16 %v279, %v278
      %v319 = vpack.c.bf16 %v281, %v280
      %v320 = vpack.c.bf16 %v283, %v282
      %v321 = vpack.c.bf16 %v285, %v284
      %v322 = vpack.c.bf16 %v287, %v286
      %v323 = vpack.c.bf16 %v289, %v288
      %v324 = vpack.c.bf16 %v291, %v290
      %v325 = vpack.c.bf16 %v293, %v292
      %v326 = vpack.c.bf16 %v295, %v294
      %v327 = vpack.c.bf16 %v297, %v296
      %v328 = vpack.c.bf16 %v299, %v298
      %v329 = vpack.c.bf16 %v301, %v300
      %v330 = vpack.c.bf16 %v303, %v302
      %v331 = vpack.c.bf16 %v305, %v304
      %v332 = vpack.c.bf16 %v307, %v306
      %v333 = vpack.c.bf16 %v309, %v308
      %v334 = vld [vmem:[%s252] sm:$0xff]
      %v335 = vld [vmem:[%s252 + $0x8] sm:$0xf]
      %v336 = vld [vmem:[%s252 + $0xc] sm:$0xff]
      %v337 = vld [vmem:[%s252 + $0x14] sm:$0xf]
      %v338 = vld [vmem:[%s252 + $0x18] sm:$0xff]
      %v339 = vld [vmem:[%s252 + $0x20] sm:$0xf]
      %v340 = vld [vmem:[%s252 + $0x24] sm:$0xff]
      %v341 = vld [vmem:[%s252 + $0x2c] sm:$0xf]
      %v342 = vld [vmem:[%s252 + $0x30] sm:$0xff]
      %v343 = vld [vmem:[%s252 + $0x38] sm:$0xf]
      %v344 = vld [vmem:[%s252 + $0x3c] sm:$0xff]
      %v345 = vld [vmem:[%s252 + $0x44] sm:$0xf]
      %v346 = vld [vmem:[%s252 + $0x48] sm:$0xff]
      %v347 = vld [vmem:[%s252 + $0x50] sm:$0xf]
      %v348 = vld [vmem:[%s252 + $0x54] sm:$0xff]
      %v349 = vld [vmem:[%s252 + $0x5c] sm:$0xf]
      %v350 = vld [vmem:[%s252 + $0x60] sm:$0xff]
      %v351 = vld [vmem:[%s252 + $0x68] sm:$0xf]
      %v352 = vld [vmem:[%s252 + $0x6c] sm:$0xff]
      %v353 = vld [vmem:[%s252 + $0x74] sm:$0xf]
      %v354 = vld [vmem:[%s252 + $0x78] sm:$0xff]
      %v355 = vld [vmem:[%s252 + $0x80] sm:$0xf]
      %v356 = vld [vmem:[%s252 + $0x84] sm:$0xff]
      %v357 = vld [vmem:[%s252 + $0x8c] sm:$0xf]
      %v358 = vld [vmem:[%s252 + $0x90] sm:$0xff]
      %v359 = vld [vmem:[%s252 + $0x98] sm:$0xf]
      %v360 = vld [vmem:[%s252 + $0x9c] sm:$0xff]
      %v361 = vld [vmem:[%s252 + $0xa4] sm:$0xf]
      %v362 = vld [vmem:[%s252 + $0xa8] sm:$0xff]
      %v363 = vld [vmem:[%s252 + $0xb0] sm:$0xf]
      %v364 = vld [vmem:[%s252 + $0xb4] sm:$0xff]
      %v365 = vld [vmem:[%s252 + $0xbc] sm:$0xf]
      %v398 = vunpack.c.l.b16 %v334
      %v399 = vunpack.c.h.b16 %v334
      %v400 = vunpack.c.l.b16 %v335
      %v401 = vunpack.c.l.b16 %v336
      %v402 = vunpack.c.h.b16 %v336
      %v403 = vunpack.c.l.b16 %v337
      %v404 = vunpack.c.l.b16 %v338
      %v405 = vunpack.c.h.b16 %v338
      %v406 = vunpack.c.l.b16 %v339
      %v407 = vunpack.c.l.b16 %v340
      %v408 = vunpack.c.h.b16 %v340
      %v409 = vunpack.c.l.b16 %v341
      %v410 = vunpack.c.l.b16 %v342
      %v411 = vunpack.c.h.b16 %v342
      %v412 = vunpack.c.l.b16 %v343
      %v413 = vunpack.c.l.b16 %v344
      %v414 = vunpack.c.h.b16 %v344
      %v415 = vunpack.c.l.b16 %v345
      %v416 = vunpack.c.l.b16 %v346
      %v417 = vunpack.c.h.b16 %v346
      %v418 = vunpack.c.l.b16 %v347
      %v419 = vunpack.c.l.b16 %v348
      %v420 = vunpack.c.h.b16 %v348
      %v421 = vunpack.c.l.b16 %v349
      %v422 = vunpack.c.l.b16 %v350
      %v423 = vunpack.c.h.b16 %v350
      %v424 = vunpack.c.l.b16 %v351
      %v425 = vunpack.c.l.b16 %v352
      %v426 = vunpack.c.h.b16 %v352
      %v427 = vunpack.c.l.b16 %v353
      %v428 = vunpack.c.l.b16 %v354
      %v429 = vunpack.c.h.b16 %v354
      %v430 = vunpack.c.l.b16 %v355
      %v431 = vunpack.c.l.b16 %v356
      %v432 = vunpack.c.h.b16 %v356
      %v433 = vunpack.c.l.b16 %v357
      %v434 = vunpack.c.l.b16 %v358
      %v435 = vunpack.c.h.b16 %v358
      %v436 = vunpack.c.l.b16 %v359
      %v437 = vunpack.c.l.b16 %v360
      %v438 = vunpack.c.h.b16 %v360
      %v439 = vunpack.c.l.b16 %v361
      %v440 = vunpack.c.l.b16 %v362
      %v441 = vunpack.c.h.b16 %v362
      %v442 = vunpack.c.l.b16 %v363
      %v443 = vunpack.c.l.b16 %v364
      %v444 = vunpack.c.h.b16 %v364
      %v445 = vunpack.c.l.b16 %v365
      %v446 = vpack.c.b16 %v401, %v398
      %v447 = vpack.c.b16 %v402, %v399
      %v448 = vpack.c.b16 %v403, %v400
      %v449 = vpack.c.b16 %v407, %v404
      %v450 = vpack.c.b16 %v408, %v405
      %v451 = vpack.c.b16 %v409, %v406
      %v452 = vpack.c.b16 %v413, %v410
      %v453 = vpack.c.b16 %v414, %v411
      %v454 = vpack.c.b16 %v415, %v412
      %v455 = vpack.c.b16 %v419, %v416
      %v456 = vpack.c.b16 %v420, %v417
      %v457 = vpack.c.b16 %v421, %v418
      %v458 = vpack.c.b16 %v425, %v422
      %v459 = vpack.c.b16 %v426, %v423
      %v460 = vpack.c.b16 %v427, %v424
      %v461 = vpack.c.b16 %v431, %v428
      %v462 = vpack.c.b16 %v432, %v429
      %v463 = vpack.c.b16 %v433, %v430
      %v464 = vpack.c.b16 %v437, %v434
      %v465 = vpack.c.b16 %v438, %v435
      %v466 = vpack.c.b16 %v439, %v436
      %v467 = vpack.c.b16 %v443, %v440
      %v468 = vpack.c.b16 %v444, %v441
      %v469 = vpack.c.b16 %v445, %v442
      %494 = vmatprep.subr.bf16.mxu0 0
      %495 = vmatpush1.bf16.msra.mxu0 %v317
      %496 = vmatprep.subr.bf16.mxu0 0
      %497 = vmatpush1.bf16.msra.mxu0 %v316
      %498 = vmatprep.subr.bf16.mxu0 0
      %499 = vmatpush1.bf16.msra.mxu0 %v315
      %500 = vmatprep.subr.bf16.mxu0 0
      %501 = vmatpush1.bf16.msra.mxu0 %v314
      %502 = vmatprep.subr.bf16.mxu0 0
      %503 = vmatpush1.bf16.msra.mxu0 %v313
      %504 = vmatprep.subr.bf16.mxu0 0
      %505 = vmatpush1.bf16.msra.mxu0 %v312
      %506 = vmatprep.subr.bf16.mxu0 0
      %507 = vmatpush1.bf16.msra.mxu0 %v311
      %508 = vmatprep.subr.bf16.mxu0 0
      %509 = vmatpush1.bf16.msra.mxu0 %v310
      %510 = vmatprep.subr.bf16.mxu0 0
      %511 = vmatpush2.bf16.msra.mxu0 %v325
      %512 = vmatprep.subr.bf16.mxu0 0
      %513 = vmatpush2.bf16.msra.mxu0 %v324
      %514 = vmatprep.subr.bf16.mxu0 0
      %515 = vmatpush2.bf16.msra.mxu0 %v323
      %516 = vmatprep.subr.bf16.mxu0 0
      %517 = vmatpush2.bf16.msra.mxu0 %v322
      %518 = vmatprep.subr.bf16.mxu0 0
      %519 = vmatpush2.bf16.msra.mxu0 %v321
      %520 = vmatprep.subr.bf16.mxu0 0
      %521 = vmatpush2.bf16.msra.mxu0 %v320
      %522 = vmatprep.subr.bf16.mxu0 0
      %523 = vmatpush2.bf16.msra.mxu0 %v319
      %524 = vmatprep.subr.bf16.mxu0 0
      %525 = vmatpush2.bf16.msra.mxu0 %v318
      %526 = vmatprep.mubr.bf16.mxu0 %v447
      %527 = vmatmul.mubr.bf16.gmra.mxu0 %v446
      %v528 = vpop.f32.mrf.mxu0
      %v529 = vadd.f32 0.0, %v528
      %v530 = vpop.f32.mrf.mxu0
      %v531 = vpop.f32.mrf.mxu0
      %v532 = vadd.f32 0.0, %v531
      %v533 = vpop.f32.mrf.mxu0
      %534 = vmatprep.mubr.bf16.mxu0 %v450
      %535 = vmatmul.mubr.bf16.gmra.mxu0 %v449
      %v536 = vpop.f32.mrf.mxu0
      %v537 = vadd.f32 0.0, %v536
      %v538 = vpop.f32.mrf.mxu0
      %v539 = vpop.f32.mrf.mxu0
      %v540 = vadd.f32 0.0, %v539
      %v541 = vpop.f32.mrf.mxu0
      %542 = vmatprep.mubr.bf16.mxu0 %v453
      %543 = vmatmul.mubr.bf16.gmra.mxu0 %v452
      %v544 = vpop.f32.mrf.mxu0
      %v545 = vadd.f32 0.0, %v544
      %v546 = vpop.f32.mrf.mxu0
      %v547 = vpop.f32.mrf.mxu0
      %v548 = vadd.f32 0.0, %v547
      %v549 = vpop.f32.mrf.mxu0
      %550 = vmatprep.mubr.bf16.mxu0 %v456
      %551 = vmatmul.mubr.bf16.gmra.mxu0 %v455
      %v552 = vpop.f32.mrf.mxu0
      %v553 = vadd.f32 0.0, %v552
      %v554 = vpop.f32.mrf.mxu0
      %v555 = vpop.f32.mrf.mxu0
      %v556 = vadd.f32 0.0, %v555
      %v557 = vpop.f32.mrf.mxu0
      %558 = vmatprep.mubr.bf16.mxu0 %v459
      %559 = vmatmul.mubr.bf16.gmra.mxu0 %v458
      %v560 = vpop.f32.mrf.mxu0
      %v561 = vadd.f32 0.0, %v560
      %v562 = vpop.f32.mrf.mxu0
      %v563 = vpop.f32.mrf.mxu0
      %v564 = vadd.f32 0.0, %v563
      %v565 = vpop.f32.mrf.mxu0
      %566 = vmatprep.mubr.bf16.mxu0 %v462
      %567 = vmatmul.mubr.bf16.gmra.mxu0 %v461
      %v568 = vpop.f32.mrf.mxu0
      %v569 = vadd.f32 0.0, %v568
      %v570 = vpop.f32.mrf.mxu0
      %v571 = vpop.f32.mrf.mxu0
      %v572 = vadd.f32 0.0, %v571
      %v573 = vpop.f32.mrf.mxu0
      %574 = vmatprep.mubr.bf16.mxu0 %v465
      %575 = vmatmul.mubr.bf16.gmra.mxu0 %v464
      %v576 = vpop.f32.mrf.mxu0
      %v577 = vadd.f32 0.0, %v576
      %v578 = vpop.f32.mrf.mxu0
      %v579 = vpop.f32.mrf.mxu0
      %v580 = vadd.f32 0.0, %v579
      %v581 = vpop.f32.mrf.mxu0
      %582 = vmatprep.mubr.bf16.mxu0 %v468
      %583 = vmatmul.mubr.bf16.gmra.mxu0 %v467
      %v584 = vpop.f32.mrf.mxu0
      %v585 = vadd.f32 0.0, %v584
      %v586 = vpop.f32.mrf.mxu0
      %v587 = vpop.f32.mrf.mxu0
      %v588 = vadd.f32 0.0, %v587
      %v589 = vpop.f32.mrf.mxu0
      %590 = vdwg.mxu0
      %591 = vmatprep.subr.bf16.mxu0 0
      %592 = vmatpush1.bf16.msra.mxu0 %v333
      %593 = vmatprep.subr.bf16.mxu0 0
      %594 = vmatpush1.bf16.msra.mxu0 %v332
      %595 = vmatprep.subr.bf16.mxu0 0
      %596 = vmatpush1.bf16.msra.mxu0 %v331
      %597 = vmatprep.subr.bf16.mxu0 0
      %598 = vmatpush1.bf16.msra.mxu0 %v330
      %599 = vmatprep.subr.bf16.mxu0 0
      %600 = vmatpush1.bf16.msra.mxu0 %v329
      %601 = vmatprep.subr.bf16.mxu0 0
      %602 = vmatpush1.bf16.msra.mxu0 %v328
      %603 = vmatprep.subr.bf16.mxu0 0
      %604 = vmatpush1.bf16.msra.mxu0 %v327
      %605 = vmatprep.subr.bf16.mxu0 0
      %606 = vmatpush1.bf16.msra.mxu0 %v326
      %607 = vmatprep.subr.bf16.mxu0 0
      %608 = vmatpush2.bf16.msra.mxu0 0
      %609 = vmatprep.subr.bf16.mxu0 0
      %610 = vmatpush2.bf16.msra.mxu0 0
      %611 = vmatprep.subr.bf16.mxu0 0
      %612 = vmatpush2.bf16.msra.mxu0 0
      %613 = vmatprep.subr.bf16.mxu0 0
      %614 = vmatpush2.bf16.msra.mxu0 0
      %615 = vmatprep.subr.bf16.mxu0 0
      %616 = vmatpush2.bf16.msra.mxu0 0
      %617 = vmatprep.subr.bf16.mxu0 0
      %618 = vmatpush2.bf16.msra.mxu0 0
      %619 = vmatprep.subr.bf16.mxu0 0
      %620 = vmatpush2.bf16.msra.mxu0 0
      %621 = vmatprep.subr.bf16.mxu0 0
      %622 = vmatpush2.bf16.msra.mxu0 0
      %623 = vmatprep.mubr.bf16.mxu0 0
      %624 = vmatmul.mubr.bf16.gmra.mxu0 %v448
      %v625 = vpop.f32.mrf.mxu0
      %v626 = vadd.f32 %v529, %v625
      %v627 = vpop.f32.mrf.mxu0
      %v628 = vpop.f32.mrf.mxu0
      %v629 = vadd.f32 %v532, %v628
      %v630 = vpop.f32.mrf.mxu0
      %631 = vmatprep.mubr.bf16.mxu0 0
      %632 = vmatmul.mubr.bf16.gmra.mxu0 %v451
      %v633 = vpop.f32.mrf.mxu0
      %v634 = vadd.f32 %v537, %v633
      %v635 = vpop.f32.mrf.mxu0
      %v636 = vpop.f32.mrf.mxu0
      %v637 = vadd.f32 %v540, %v636
      %v638 = vpop.f32.mrf.mxu0
      %639 = vmatprep.mubr.bf16.mxu0 0
      %640 = vmatmul.mubr.bf16.gmra.mxu0 %v454
      %v641 = vpop.f32.mrf.mxu0
      %v642 = vadd.f32 %v545, %v641
      %v643 = vpop.f32.mrf.mxu0
      %v644 = vpop.f32.mrf.mxu0
      %v645 = vadd.f32 %v548, %v644
      %v646 = vpop.f32.mrf.mxu0
      %647 = vmatprep.mubr.bf16.mxu0 0
      %648 = vmatmul.mubr.bf16.gmra.mxu0 %v457
      %v649 = vpop.f32.mrf.mxu0
      %v650 = vadd.f32 %v553, %v649
      %v651 = vpop.f32.mrf.mxu0
      %v652 = vpop.f32.mrf.mxu0
      %v653 = vadd.f32 %v556, %v652
      %v654 = vpop.f32.mrf.mxu0
      %655 = vmatprep.mubr.bf16.mxu0 0
      %656 = vmatmul.mubr.bf16.gmra.mxu0 %v460
      %v657 = vpop.f32.mrf.mxu0
      %v658 = vadd.f32 %v561, %v657
      %v659 = vpop.f32.mrf.mxu0
      %v660 = vpop.f32.mrf.mxu0
      %v661 = vadd.f32 %v564, %v660
      %v662 = vpop.f32.mrf.mxu0
      %663 = vmatprep.mubr.bf16.mxu0 0
      %664 = vmatmul.mubr.bf16.gmra.mxu0 %v463
      %v665 = vpop.f32.mrf.mxu0
      %v666 = vadd.f32 %v569, %v665
      %v667 = vpop.f32.mrf.mxu0
      %v668 = vpop.f32.mrf.mxu0
      %v669 = vadd.f32 %v572, %v668
      %v670 = vpop.f32.mrf.mxu0
      %671 = vmatprep.mubr.bf16.mxu0 0
      %672 = vmatmul.mubr.bf16.gmra.mxu0 %v466
      %v673 = vpop.f32.mrf.mxu0
      %v674 = vadd.f32 %v577, %v673
      %v675 = vpop.f32.mrf.mxu0
      %v676 = vpop.f32.mrf.mxu0
      %v677 = vadd.f32 %v580, %v676
      %v678 = vpop.f32.mrf.mxu0
      %679 = vmatprep.mubr.bf16.mxu0 0
      %680 = vmatmul.mubr.bf16.gmra.mxu0 %v469
      %v681 = vpop.f32.mrf.mxu0
      %v682 = vadd.f32 %v585, %v681
      %v683 = vpop.f32.mrf.mxu0
      %v684 = vpop.f32.mrf.mxu0
      %v685 = vadd.f32 %v588, %v684
      %v686 = vpop.f32.mrf.mxu0
      %687 = vdwg.mxu0
      %s688 = scalar_lea.vmem %s1, %s261
      %v689 = vld [vmem:[%s688] sm:$0xff]
      %v690 = vld [vmem:[%s688 + $0x8] sm:$0xff]
      %v691 = vld [vmem:[%s688 + $0x10] sm:$0xff]
      %v692 = vld [vmem:[%s688 + $0x18] sm:$0xff]
      %v693 = vld [vmem:[%s688 + $0x20] sm:$0xff]
      %v694 = vld [vmem:[%s688 + $0x28] sm:$0xff]
      %v695 = vld [vmem:[%s688 + $0x30] sm:$0xff]
      %v696 = vld [vmem:[%s688 + $0x38] sm:$0xff]
      %v697 = vld [vmem:[%s688 + $0x40] sm:$0xff]
      %v698 = vld [vmem:[%s688 + $0x48] sm:$0xff]
      %v699 = vld [vmem:[%s688 + $0x50] sm:$0xff]
      %v700 = vld [vmem:[%s688 + $0x58] sm:$0xff]
      %v701 = vld [vmem:[%s688 + $0x60] sm:$0xff]
      %v702 = vld [vmem:[%s688 + $0x68] sm:$0xff]
      %v703 = vld [vmem:[%s688 + $0x70] sm:$0xff]
      %v704 = vld [vmem:[%s688 + $0x78] sm:$0xff]
      %v705 = vpack.c.bf16 %v690, %v689
      %v706 = vpack.c.bf16 %v692, %v691
      %v707 = vpack.c.bf16 %v694, %v693
      %v708 = vpack.c.bf16 %v696, %v695
      %v709 = vpack.c.bf16 %v698, %v697
      %v710 = vpack.c.bf16 %v700, %v699
      %v711 = vpack.c.bf16 %v702, %v701
      %v712 = vpack.c.bf16 %v704, %v703
      %v713 = vld [vmem:[%s2] sm:$0xf]
      %v714 = vld [vmem:[%s2 + $0x4] sm:$0xf]
      %v715 = vld [vmem:[%s2 + $0x8] sm:$0xf]
      %v716 = vld [vmem:[%s2 + $0xc] sm:$0xf]
      %v717 = vld [vmem:[%s2 + $0x10] sm:$0xf]
      %v718 = vld [vmem:[%s2 + $0x14] sm:$0xf]
      %v719 = vld [vmem:[%s2 + $0x18] sm:$0xf]
      %v720 = vld [vmem:[%s2 + $0x1c] sm:$0xf]
      %v721 = vld [vmem:[%s2 + $0x20] sm:$0xf]
      %v722 = vld [vmem:[%s2 + $0x24] sm:$0xf]
      %v723 = vld [vmem:[%s2 + $0x28] sm:$0xf]
      %v724 = vld [vmem:[%s2 + $0x2c] sm:$0xf]
      %v725 = vld [vmem:[%s2 + $0x30] sm:$0xf]
      %v726 = vld [vmem:[%s2 + $0x34] sm:$0xf]
      %v727 = vld [vmem:[%s2 + $0x38] sm:$0xf]
      %v728 = vld [vmem:[%s2 + $0x3c] sm:$0xf]
      %v729 = vld [vmem:[%s3] sm:$0x1]
      %v731 = vlaneseq
      %v732 = vshrl.u32 %v731, 7
      %v733 = vsub.s32 0, %v732
      %v734 = vrot.slane %v729, %v733
      %v752 = vunpack.c.l.b16 %v713
      %v753 = vunpack.c.l.b16 %v714
      %v754 = vunpack.c.l.b16 %v715
      %v755 = vunpack.c.l.b16 %v716
      %v756 = vunpack.c.l.b16 %v717
      %v757 = vunpack.c.l.b16 %v718
      %v758 = vunpack.c.l.b16 %v719
      %v759 = vunpack.c.l.b16 %v720
      %v760 = vunpack.c.l.b16 %v721
      %v761 = vunpack.c.l.b16 %v722
      %v762 = vunpack.c.l.b16 %v723
      %v763 = vunpack.c.l.b16 %v724
      %v764 = vunpack.c.l.b16 %v725
      %v765 = vunpack.c.l.b16 %v726
      %v766 = vunpack.c.l.b16 %v727
      %v767 = vunpack.c.l.b16 %v728
      %v768 = vpack.c.b16 %v753, %v752
      %v769 = vpack.c.b16 %v755, %v754
      %v770 = vpack.c.b16 %v757, %v756
      %v771 = vpack.c.b16 %v759, %v758
      %v772 = vpack.c.b16 %v761, %v760
      %v773 = vpack.c.b16 %v763, %v762
      %v774 = vpack.c.b16 %v765, %v764
      %v775 = vpack.c.b16 %v767, %v766
      %784 = vmatprep.subr.bf16.mxu0 0
      %785 = vmatpush1.bf16.msra.mxu0 %v775
      %786 = vmatprep.subr.bf16.mxu0 0
      %787 = vmatpush1.bf16.msra.mxu0 %v774
      %788 = vmatprep.subr.bf16.mxu0 0
      %789 = vmatpush1.bf16.msra.mxu0 %v773
      %790 = vmatprep.subr.bf16.mxu0 0
      %791 = vmatpush1.bf16.msra.mxu0 %v772
      %792 = vmatprep.subr.bf16.mxu0 0
      %793 = vmatpush1.bf16.msra.mxu0 %v771
      %794 = vmatprep.subr.bf16.mxu0 0
      %795 = vmatpush1.bf16.msra.mxu0 %v770
      %796 = vmatprep.subr.bf16.mxu0 0
      %797 = vmatpush1.bf16.msra.mxu0 %v769
      %798 = vmatprep.subr.bf16.mxu0 0
      %799 = vmatpush1.bf16.msra.mxu0 %v768
      %800 = vmatprep.subr.bf16.mxu0 0
      %801 = vmatpush2.bf16.msra.mxu0 0
      %802 = vmatprep.subr.bf16.mxu0 0
      %803 = vmatpush2.bf16.msra.mxu0 0
      %804 = vmatprep.subr.bf16.mxu0 0
      %805 = vmatpush2.bf16.msra.mxu0 0
      %806 = vmatprep.subr.bf16.mxu0 0
      %807 = vmatpush2.bf16.msra.mxu0 0
      %808 = vmatprep.subr.bf16.mxu0 0
      %809 = vmatpush2.bf16.msra.mxu0 0
      %810 = vmatprep.subr.bf16.mxu0 0
      %811 = vmatpush2.bf16.msra.mxu0 0
      %812 = vmatprep.subr.bf16.mxu0 0
      %813 = vmatpush2.bf16.msra.mxu0 0
      %814 = vmatprep.subr.bf16.mxu0 0
      %815 = vmatpush2.bf16.msra.mxu0 0
      %816 = vmatprep.mubr.bf16.mxu0 0
      %817 = vmatmul.mubr.bf16.gmra.mxu0 %v705
      %v818 = vpop.f32.mrf.mxu0
      %v819 = vadd.f32 %v734, %v818
      %v820 = vpop.f32.mrf.mxu0
      %v821 = vpop.f32.mrf.mxu0
      %v822 = vadd.f32 %v734, %v821
      %v823 = vpop.f32.mrf.mxu0
      %824 = vmatprep.mubr.bf16.mxu0 0
      %825 = vmatmul.mubr.bf16.gmra.mxu0 %v706
      %v826 = vpop.f32.mrf.mxu0
      %v827 = vadd.f32 %v734, %v826
      %v828 = vpop.f32.mrf.mxu0
      %v829 = vpop.f32.mrf.mxu0
      %v830 = vadd.f32 %v734, %v829
      %v831 = vpop.f32.mrf.mxu0
      %832 = vmatprep.mubr.bf16.mxu0 0
      %833 = vmatmul.mubr.bf16.gmra.mxu0 %v707
      %v834 = vpop.f32.mrf.mxu0
      %v835 = vadd.f32 %v734, %v834
      %v836 = vpop.f32.mrf.mxu0
      %v837 = vpop.f32.mrf.mxu0
      %v838 = vadd.f32 %v734, %v837
      %v839 = vpop.f32.mrf.mxu0
      %840 = vmatprep.mubr.bf16.mxu0 0
      %841 = vmatmul.mubr.bf16.gmra.mxu0 %v708
      %v842 = vpop.f32.mrf.mxu0
      %v843 = vadd.f32 %v734, %v842
      %v844 = vpop.f32.mrf.mxu0
      %v845 = vpop.f32.mrf.mxu0
      %v846 = vadd.f32 %v734, %v845
      %v847 = vpop.f32.mrf.mxu0
      %848 = vmatprep.mubr.bf16.mxu0 0
      %849 = vmatmul.mubr.bf16.gmra.mxu0 %v709
      %v850 = vpop.f32.mrf.mxu0
      %v851 = vadd.f32 %v734, %v850
      %v852 = vpop.f32.mrf.mxu0
      %v853 = vpop.f32.mrf.mxu0
      %v854 = vadd.f32 %v734, %v853
      %v855 = vpop.f32.mrf.mxu0
      %856 = vmatprep.mubr.bf16.mxu0 0
      %857 = vmatmul.mubr.bf16.gmra.mxu0 %v710
      %v858 = vpop.f32.mrf.mxu0
      %v859 = vadd.f32 %v734, %v858
      %v860 = vpop.f32.mrf.mxu0
      %v861 = vpop.f32.mrf.mxu0
      %v862 = vadd.f32 %v734, %v861
      %v863 = vpop.f32.mrf.mxu0
      %864 = vmatprep.mubr.bf16.mxu0 0
      %865 = vmatmul.mubr.bf16.gmra.mxu0 %v711
      %v866 = vpop.f32.mrf.mxu0
      %v867 = vadd.f32 %v734, %v866
      %v868 = vpop.f32.mrf.mxu0
      %v869 = vpop.f32.mrf.mxu0
      %v870 = vadd.f32 %v734, %v869
      %v871 = vpop.f32.mrf.mxu0
      %872 = vmatprep.mubr.bf16.mxu0 0
      %873 = vmatmul.mubr.bf16.gmra.mxu0 %v712
      %v874 = vpop.f32.mrf.mxu0
      %v875 = vadd.f32 %v734, %v874
      %v876 = vpop.f32.mrf.mxu0
      %v877 = vpop.f32.mrf.mxu0
      %v878 = vadd.f32 %v734, %v877
      %v879 = vpop.f32.mrf.mxu0
      %880 = vdwg.mxu0
      %v881 = vld [vmem:[%s4] sm:$0x1]
      %v883 = vlaneseq
      %v884 = vshrl.u32 %v883, 7
      %v885 = vsub.s32 0, %v884
      %v886 = vrot.slane %v881, %v885
      %v888 = vmul.f32 %v819, %v886
      %v889 = vmul.f32 %v822, %v886
      %v890 = vmul.f32 %v827, %v886
      %v891 = vmul.f32 %v830, %v886
      %v892 = vmul.f32 %v835, %v886
      %v893 = vmul.f32 %v838, %v886
      %v894 = vmul.f32 %v843, %v886
      %v895 = vmul.f32 %v846, %v886
      %v896 = vmul.f32 %v851, %v886
      %v897 = vmul.f32 %v854, %v886
      %v898 = vmul.f32 %v859, %v886
      %v899 = vmul.f32 %v862, %v886
      %v900 = vmul.f32 %v867, %v886
      %v901 = vmul.f32 %v870, %v886
      %v902 = vmul.f32 %v875, %v886
      %v903 = vmul.f32 %v878, %v886
      %904 = vadd.xlane.f32.xlu0 %v888
      %v905 = vpop.xlane.xlu0 %904
      %906 = vadd.xlane.f32.xlu0 %v889
      %v907 = vpop.xlane.xlu0 %906
      %908 = vadd.xlane.f32.xlu0 %v890
      %v909 = vpop.xlane.xlu0 %908
      %910 = vadd.xlane.f32.xlu0 %v891
      %v911 = vpop.xlane.xlu0 %910
      %912 = vadd.xlane.f32.xlu0 %v892
      %v913 = vpop.xlane.xlu0 %912
      %914 = vadd.xlane.f32.xlu0 %v893
      %v915 = vpop.xlane.xlu0 %914
      %916 = vadd.xlane.f32.xlu0 %v894
      %v917 = vpop.xlane.xlu0 %916
      %918 = vadd.xlane.f32.xlu0 %v895
      %v919 = vpop.xlane.xlu0 %918
      %920 = vadd.xlane.f32.xlu0 %v896
      %v921 = vpop.xlane.xlu0 %920
      %922 = vadd.xlane.f32.xlu0 %v897
      %v923 = vpop.xlane.xlu0 %922
      %924 = vadd.xlane.f32.xlu0 %v898
      %v925 = vpop.xlane.xlu0 %924
      %926 = vadd.xlane.f32.xlu0 %v899
      %v927 = vpop.xlane.xlu0 %926
      %928 = vadd.xlane.f32.xlu0 %v900
      %v929 = vpop.xlane.xlu0 %928
      %930 = vadd.xlane.f32.xlu0 %v901
      %v931 = vpop.xlane.xlu0 %930
      %932 = vadd.xlane.f32.xlu0 %v902
      %v933 = vpop.xlane.xlu0 %932
      %934 = vadd.xlane.f32.xlu0 %v903
      %v935 = vpop.xlane.xlu0 %934
      %v936 = vld [vmem:[#allocation2] sm:$0x1]
      %v938 = vlaneseq
      %v939 = vshrl.u32 %v938, 7
      %v940 = vsub.s32 0, %v939
      %v941 = vrot.slane %v936, %v940
      %v943 = vadd.f32 %v905, %v941
      %v944 = vadd.f32 %v907, %v941
      %v945 = vadd.f32 %v909, %v941
      %v946 = vadd.f32 %v911, %v941
      %v947 = vadd.f32 %v913, %v941
      %v948 = vadd.f32 %v915, %v941
      %v949 = vadd.f32 %v917, %v941
      %v950 = vadd.f32 %v919, %v941
      %v951 = vadd.f32 %v921, %v941
      %v952 = vadd.f32 %v923, %v941
      %v953 = vadd.f32 %v925, %v941
      %v954 = vadd.f32 %v927, %v941
      %v955 = vadd.f32 %v929, %v941
      %v956 = vadd.f32 %v931, %v941
      %v957 = vadd.f32 %v933, %v941
      %v958 = vadd.f32 %v935, %v941
      %v959 = vxor.u32 %v943, 2147483648
      %v960 = vxor.u32 %v944, 2147483648
      %v961 = vxor.u32 %v945, 2147483648
      %v962 = vxor.u32 %v946, 2147483648
      %v963 = vxor.u32 %v947, 2147483648
      %v964 = vxor.u32 %v948, 2147483648
      %v965 = vxor.u32 %v949, 2147483648
      %v966 = vxor.u32 %v950, 2147483648
      %v967 = vxor.u32 %v951, 2147483648
      %v968 = vxor.u32 %v952, 2147483648
      %v969 = vxor.u32 %v953, 2147483648
      %v970 = vxor.u32 %v954, 2147483648
      %v971 = vxor.u32 %v955, 2147483648
      %v972 = vxor.u32 %v956, 2147483648
      %v973 = vxor.u32 %v957, 2147483648
      %v974 = vxor.u32 %v958, 2147483648
      %v975 = vmul.f32 %v959, 1.442695
      %v976 = vpow.pop %v975
      %v977 = vmul.f32 %v960, 1.442695
      %v978 = vpow.pop %v977
      %v979 = vmul.f32 %v961, 1.442695
      %v980 = vpow.pop %v979
      %v981 = vmul.f32 %v962, 1.442695
      %v982 = vpow.pop %v981
      %v983 = vmul.f32 %v963, 1.442695
      %v984 = vpow.pop %v983
      %v985 = vmul.f32 %v964, 1.442695
      %v986 = vpow.pop %v985
      %v987 = vmul.f32 %v965, 1.442695
      %v988 = vpow.pop %v987
      %v989 = vmul.f32 %v966, 1.442695
      %v990 = vpow.pop %v989
      %v991 = vmul.f32 %v967, 1.442695
      %v992 = vpow.pop %v991
      %v993 = vmul.f32 %v968, 1.442695
      %v994 = vpow.pop %v993
      %v995 = vmul.f32 %v969, 1.442695
      %v996 = vpow.pop %v995
      %v997 = vmul.f32 %v970, 1.442695
      %v998 = vpow.pop %v997
      %v999 = vmul.f32 %v971, 1.442695
      %v1000 = vpow.pop %v999
      %v1001 = vmul.f32 %v972, 1.442695
      %v1002 = vpow.pop %v1001
      %v1003 = vmul.f32 %v973, 1.442695
      %v1004 = vpow.pop %v1003
      %v1005 = vmul.f32 %v974, 1.442695
      %v1006 = vpow.pop %v1005
      %v1007 = vadd.f32 %v976, 1.0
      %v1008 = vadd.f32 %v978, 1.0
      %v1009 = vadd.f32 %v980, 1.0
      %v1010 = vadd.f32 %v982, 1.0
      %v1011 = vadd.f32 %v984, 1.0
      %v1012 = vadd.f32 %v986, 1.0
      %v1013 = vadd.f32 %v988, 1.0
      %v1014 = vadd.f32 %v990, 1.0
      %v1015 = vadd.f32 %v992, 1.0
      %v1016 = vadd.f32 %v994, 1.0
      %v1017 = vadd.f32 %v996, 1.0
      %v1018 = vadd.f32 %v998, 1.0
      %v1019 = vadd.f32 %v1000, 1.0
      %v1020 = vadd.f32 %v1002, 1.0
      %v1021 = vadd.f32 %v1004, 1.0
      %v1022 = vadd.f32 %v1006, 1.0
      %v1023 = vrcp.pop %v1007
      %v1024 = vmul.f32 1.0, %v1023
      %v1025 = vrcp.pop %v1008
      %v1026 = vmul.f32 1.0, %v1025
      %v1027 = vrcp.pop %v1009
      %v1028 = vmul.f32 1.0, %v1027
      %v1029 = vrcp.pop %v1010
      %v1030 = vmul.f32 1.0, %v1029
      %v1031 = vrcp.pop %v1011
      %v1032 = vmul.f32 1.0, %v1031
      %v1033 = vrcp.pop %v1012
      %v1034 = vmul.f32 1.0, %v1033
      %v1035 = vrcp.pop %v1013
      %v1036 = vmul.f32 1.0, %v1035
      %v1037 = vrcp.pop %v1014
      %v1038 = vmul.f32 1.0, %v1037
      %v1039 = vrcp.pop %v1015
      %v1040 = vmul.f32 1.0, %v1039
      %v1041 = vrcp.pop %v1016
      %v1042 = vmul.f32 1.0, %v1041
      %v1043 = vrcp.pop %v1017
      %v1044 = vmul.f32 1.0, %v1043
      %v1045 = vrcp.pop %v1018
      %v1046 = vmul.f32 1.0, %v1045
      %v1047 = vrcp.pop %v1019
      %v1048 = vmul.f32 1.0, %v1047
      %v1049 = vrcp.pop %v1020
      %v1050 = vmul.f32 1.0, %v1049
      %v1051 = vrcp.pop %v1021
      %v1052 = vmul.f32 1.0, %v1051
      %v1053 = vrcp.pop %v1022
      %v1054 = vmul.f32 1.0, %v1053
      %1056 = vset.pattern.permute.xlu0 0
      %1057 = vperm.xlu0 %1056, %v1024
      %v1058 = vpop.permute.xlu0 %1057
      %1061 = vset.pattern.permute.xlu0 0
      %1062 = vperm.xlu0 %1061, %v1026
      %v1063 = vpop.permute.xlu0 %1062
      %1066 = vset.pattern.permute.xlu0 0
      %1067 = vperm.xlu0 %1066, %v1028
      %v1068 = vpop.permute.xlu0 %1067
      %1071 = vset.pattern.permute.xlu0 0
      %1072 = vperm.xlu0 %1071, %v1030
      %v1073 = vpop.permute.xlu0 %1072
      %1076 = vset.pattern.permute.xlu0 0
      %1077 = vperm.xlu0 %1076, %v1032
      %v1078 = vpop.permute.xlu0 %1077
      %1081 = vset.pattern.permute.xlu0 0
      %1082 = vperm.xlu0 %1081, %v1034
      %v1083 = vpop.permute.xlu0 %1082
      %1086 = vset.pattern.permute.xlu0 0
      %1087 = vperm.xlu0 %1086, %v1036
      %v1088 = vpop.permute.xlu0 %1087
      %1091 = vset.pattern.permute.xlu0 0
      %1092 = vperm.xlu0 %1091, %v1038
      %v1093 = vpop.permute.xlu0 %1092
      %1096 = vset.pattern.permute.xlu0 0
      %1097 = vperm.xlu0 %1096, %v1040
      %v1098 = vpop.permute.xlu0 %1097
      %1101 = vset.pattern.permute.xlu0 0
      %1102 = vperm.xlu0 %1101, %v1042
      %v1103 = vpop.permute.xlu0 %1102
      %1106 = vset.pattern.permute.xlu0 0
      %1107 = vperm.xlu0 %1106, %v1044
      %v1108 = vpop.permute.xlu0 %1107
      %1111 = vset.pattern.permute.xlu0 0
      %1112 = vperm.xlu0 %1111, %v1046
      %v1113 = vpop.permute.xlu0 %1112
      %1116 = vset.pattern.permute.xlu0 0
      %1117 = vperm.xlu0 %1116, %v1048
      %v1118 = vpop.permute.xlu0 %1117
      %1121 = vset.pattern.permute.xlu0 0
      %1122 = vperm.xlu0 %1121, %v1050
      %v1123 = vpop.permute.xlu0 %1122
      %1126 = vset.pattern.permute.xlu0 0
      %1127 = vperm.xlu0 %1126, %v1052
      %v1128 = vpop.permute.xlu0 %1127
      %1131 = vset.pattern.permute.xlu0 0
      %1132 = vperm.xlu0 %1131, %v1054
      %v1133 = vpop.permute.xlu0 %1132
      %v1135 = vmul.f32 %v1058, %v626
      %v1136 = vmul.f32 %v1063, %v629
      %v1137 = vmul.f32 %v1068, %v634
      %v1138 = vmul.f32 %v1073, %v637
      %v1139 = vmul.f32 %v1078, %v642
      %v1140 = vmul.f32 %v1083, %v645
      %v1141 = vmul.f32 %v1088, %v650
      %v1142 = vmul.f32 %v1093, %v653
      %v1143 = vmul.f32 %v1098, %v658
      %v1144 = vmul.f32 %v1103, %v661
      %v1145 = vmul.f32 %v1108, %v666
      %v1146 = vmul.f32 %v1113, %v669
      %v1147 = vmul.f32 %v1118, %v674
      %v1148 = vmul.f32 %v1123, %v677
      %v1149 = vmul.f32 %v1128, %v682
      %v1150 = vmul.f32 %v1133, %v685
      %v1151 = vsub.f32 %v1135, %v689
      %v1152 = vsub.f32 %v1136, %v690
      %v1153 = vsub.f32 %v1137, %v691
      %v1154 = vsub.f32 %v1138, %v692
      %v1155 = vsub.f32 %v1139, %v693
      %v1156 = vsub.f32 %v1140, %v694
      %v1157 = vsub.f32 %v1141, %v695
      %v1158 = vsub.f32 %v1142, %v696
      %v1159 = vsub.f32 %v1143, %v697
      %v1160 = vsub.f32 %v1144, %v698
      %v1161 = vsub.f32 %v1145, %v699
      %v1162 = vsub.f32 %v1146, %v700
      %v1163 = vsub.f32 %v1147, %v701
      %v1164 = vsub.f32 %v1148, %v702
      %v1165 = vsub.f32 %v1149, %v703
      %v1166 = vsub.f32 %v1150, %v704
      %v1167 = vpack.c.bf16 %v1152, %v1151
      %v1168 = vpack.c.bf16 %v1154, %v1153
      %v1169 = vpack.c.bf16 %v1156, %v1155
      %v1170 = vpack.c.bf16 %v1158, %v1157
      %v1171 = vpack.c.bf16 %v1160, %v1159
      %v1172 = vpack.c.bf16 %v1162, %v1161
      %v1173 = vpack.c.bf16 %v1164, %v1163
      %v1174 = vpack.c.bf16 %v1166, %v1165
      %v1183 = vunpack.c.l.b16 %v1167
      %v1184 = vunpack.c.h.b16 %v1167
      %v1185 = vunpack.c.l.b16 %v1168
      %v1186 = vunpack.c.h.b16 %v1168
      %v1187 = vunpack.c.l.b16 %v1169
      %v1188 = vunpack.c.h.b16 %v1169
      %v1189 = vunpack.c.l.b16 %v1170
      %v1190 = vunpack.c.h.b16 %v1170
      %v1191 = vunpack.c.l.b16 %v1171
      %v1192 = vunpack.c.h.b16 %v1171
      %v1193 = vunpack.c.l.b16 %v1172
      %v1194 = vunpack.c.h.b16 %v1172
      %v1195 = vunpack.c.l.b16 %v1173
      %v1196 = vunpack.c.h.b16 %v1173
      %v1197 = vunpack.c.l.b16 %v1174
      %v1198 = vunpack.c.h.b16 %v1174
      %v1199 = vpack.c.b16 %v1183, %v1183
      %v1200 = vpack.c.b16 %v1184, %v1184
      %v1201 = vpack.c.b16 %v1185, %v1185
      %v1202 = vpack.c.b16 %v1186, %v1186
      %v1203 = vpack.c.b16 %v1187, %v1187
      %v1204 = vpack.c.b16 %v1188, %v1188
      %v1205 = vpack.c.b16 %v1189, %v1189
      %v1206 = vpack.c.b16 %v1190, %v1190
      %v1207 = vpack.c.b16 %v1191, %v1191
      %v1208 = vpack.c.b16 %v1192, %v1192
      %v1209 = vpack.c.b16 %v1193, %v1193
      %v1210 = vpack.c.b16 %v1194, %v1194
      %v1211 = vpack.c.b16 %v1195, %v1195
      %v1212 = vpack.c.b16 %v1196, %v1196
      %v1213 = vpack.c.b16 %v1197, %v1197
      %v1214 = vpack.c.b16 %v1198, %v1198
      %1231 = vst [vmem:[%s258] sm:$0xf] %v1199
      %1232 = vst [vmem:[%s258 + $0x4] sm:$0xf] %v1200
      %1233 = vst [vmem:[%s258 + $0x8] sm:$0xf] %v1201
      %1234 = vst [vmem:[%s258 + $0xc] sm:$0xf] %v1202
      %1235 = vst [vmem:[%s258 + $0x10] sm:$0xf] %v1203
      %1236 = vst [vmem:[%s258 + $0x14] sm:$0xf] %v1204
      %1237 = vst [vmem:[%s258 + $0x18] sm:$0xf] %v1205
      %1238 = vst [vmem:[%s258 + $0x1c] sm:$0xf] %v1206
      %1239 = vst [vmem:[%s258 + $0x20] sm:$0xf] %v1207
      %1240 = vst [vmem:[%s258 + $0x24] sm:$0xf] %v1208
      %1241 = vst [vmem:[%s258 + $0x28] sm:$0xf] %v1209
      %1242 = vst [vmem:[%s258 + $0x2c] sm:$0xf] %v1210
      %1243 = vst [vmem:[%s258 + $0x30] sm:$0xf] %v1211
      %1244 = vst [vmem:[%s258 + $0x34] sm:$0xf] %v1212
      %1245 = vst [vmem:[%s258 + $0x38] sm:$0xf] %v1213
      %1246 = vst [vmem:[%s258 + $0x3c] sm:$0xf] %v1214
      %s1247 = smul.u32 16, %s19
      %p1248 = scmp.lt.s32.totalorder %s1247, 47
      %s1249 = scalar_select %p1248, %s1247, 47
      %s1250 = smul.addr %s1249, 4
      %s1251 = scalar_lea.vmem %s6, %s1250
      // Predicated region
      $region45: #{forward.1} parent=43 // pred_check
        %p1252 = pneg %p168
      $region46: #{forward.1} parent=43 // pred_check_branch
        %1254 = sbr.rel (%p1252) target = $region48
      $region47: #{forward.1} parent=43 // pred_region
        %s1255 = smul.u32 16, %s19
      $region48: #{forward.1} parent=43 // pred_fallthru
        _
    $region44: #{forward.1} parent=5 // pred_fallthru
      _
    %p1256 = scmp.le.s32.totalorder 2, %s14
    // Predicated region
    $region49: #{forward.1} parent=5 // pred_check
      %p1257 = pneg %p1256
    $region50: #{forward.1} parent=5 // pred_check_branch
      %1259 = sbr.rel (%p1257) target = $region52
    $region51: #{forward.1} parent=5 // pred_region
      %s1260 = ssub.s32 %s14, 2
      // Predicated region
      $region53: #{forward.1} parent=51 // pred_check
        %p1261 = pneg %p174
      $region54: #{forward.1} parent=51 // pred_check_branch
        %1263 = sbr.rel (%p1261) target = $region56
      $region55: #{forward.1} parent=51 // pred_region
        %s1264 = smul.u32 16, %s20
        %p1265 = scmp.lt.s32.totalorder %s1264, 47
        %s1266 = scalar_select %p1265, %s1264, 47
        %s1267 = smul.addr %s1266, 4
        %s1268 = scalar_lea.vmem %s6, %s1267
      $region56: #{forward.1} parent=51 // pred_fallthru
        _
    $region52: #{forward.1} parent=5 // pred_fallthru
      _
  $region6: #{forward.1} parent=0 // loop_footer
    %s18 = sadd.s32 1, %s14
  $region7: #{forward.1} parent=0 // loop_footer_branch
    %13 = sbr.rel target = $region3
  $region8: #{forward.1} parent=0 // loop_exit
    _

</llo_original>
